<compile_context>
chip_gen: v7x
topology: tpu7x:2x2x1
jax: 0.10.0
libtpu: 0.0.40
codegen_flags: <defaults>
</compile_context>

<pallas_src>
import functools

import jax
import jax.numpy as jnp
from jax.experimental import pallas as pl
from jax.experimental.pallas import tpu as pltpu


def _transform_kernel(x_ref, w_ref, o_ref, *, log_normalize, sqrt_normalize,
                      logits, elu):
    # x_ref: (TB, S, L) block of sentences; w_ref: (L, R); o_ref: (1, 1, TB*S*S)
    x = x_ref[...].astype(jnp.float32)                     # (TB, S, L)
    tb, s, l = x.shape

    # optional normalizations (elementwise, VPU/EUP)
    if log_normalize:
        x = jnp.log(jnp.abs(x) + 1.0)
    if sqrt_normalize:
        x = jnp.sqrt(jnp.abs(x))

    w = w_ref[...].astype(jnp.float32)                     # (L, R)
    r = w.shape[1]

    # projection: one MXU matmul on the collapsed (TB*S, L) slab
    p = jnp.dot(x.reshape(tb * s, l), w,
                preferred_element_type=jnp.float32)        # (TB*S, R)

    # optional activations
    if logits:
        p = jax.nn.sigmoid(p)
    if elu:
        p = jnp.where(p > 0.0, p, jnp.expm1(p))            # elu(alpha=1)

    p = p.reshape(tb, s, r)

    # pairwise Euclidean distances per sentence, diff-based (VPU):
    # numerically exact (zeros on the diagonal), no Gram cancellation.
    # TODO(synk): for very large S/R, switch to a tiled Gram-matrix path over
    # (i, j) S-tiles instead of materializing the (TB, S, S, R) diff.
    diff = p[:, :, None, :] - p[:, None, :, :]             # (TB, S, S, R)
    d2 = jnp.sum(diff * diff, axis=-1)                     # (TB, S, S)
    d = jnp.sqrt(d2)

    # lane-dense store: all TB*S*S distances flattened along the lane dim.
    o_ref[...] = d.reshape(1, 1, tb * s * s).astype(o_ref.dtype)


def transform_optimizer_forward(sentences, weights, *, log_normalize,
                                sqrt_normalize, logits, elu,
                                block_sentences=None):
    B, S, L = sentences.shape
    Lw, R = weights.shape
    assert L == Lw, "layer_size mismatch"

    # ---- pick TB = sentences per grid step --------------------------------
    if block_sentences is None:
        # Keep per-step input block, output block and the (TB,S,S,R) diff
        # intermediate inside a conservative ~8 MiB budget (fits double
        # buffering under the scoped VMEM default on v5e/v6e/v7x).
        per_sentence_bytes = 4 * (S * L + S * S + S * S * R)
        tb_cap = max(1, (8 * 1024 * 1024) // per_sentence_bytes)
        TB = min(128, tb_cap, B)
        if B >= 2:
            # keep at least 2 grid steps so v7x's two TensorCores both work.
            TB = min(TB, pl.cdiv(B, 2))
        TB = max(TB, 1)
    else:
        TB = max(1, min(block_sentences, B))

    NB = pl.cdiv(B, TB)
    B_pad = NB * TB
    if B_pad != B:
        sentences = jnp.pad(sentences, ((0, B_pad - B), (0, 0), (0, 0)))

    kernel = functools.partial(
        _transform_kernel,
        log_normalize=log_normalize,
        sqrt_normalize=sqrt_normalize,
        logits=logits,
        elu=elu,
    )

    flops = 2 * B_pad * S * L * R + 3 * B_pad * S * S * R
    transcendentals = B_pad * S * (
        L * (int(log_normalize) + int(sqrt_normalize))
        + R * (int(logits) + int(elu)) + S)
    bytes_accessed = 4 * (B_pad * S * L + L * R + B_pad * S * S)

    out_flat = pl.pallas_call(
        kernel,
        out_shape=jax.ShapeDtypeStruct((NB, 1, TB * S * S), jnp.float32),
        grid_spec=pltpu.PrefetchScalarGridSpec(
            num_scalar_prefetch=0,
            grid=(NB,),
            in_specs=[
                pl.BlockSpec((TB, S, L), lambda b: (b, 0, 0)),   # TB sentences
                pl.BlockSpec((L, R), lambda b: (0, 0)),          # shared weights
            ],
            out_specs=pl.BlockSpec((1, 1, TB * S * S), lambda b: (b, 0, 0)),
        ),
        compiler_params=pltpu.CompilerParams(
            dimension_semantics=("parallel",)),
        cost_estimate=pl.CostEstimate(
            flops=flops,
            transcendentals=transcendentals,
            bytes_accessed=bytes_accessed),
    )(sentences, weights)

    out = out_flat.reshape(B_pad, S, S)
    return out[:B]


def _reference_forward(sentences, weights, *, log_normalize, sqrt_normalize,
                       logits, elu):
    x = sentences.astype(jnp.float32)
    if log_normalize:
        x = jnp.log(jnp.abs(x) + 1.0)
    if sqrt_normalize:
        x = jnp.sqrt(jnp.abs(x))
    p = jnp.einsum("bsl,lr->bsr", x, weights.astype(jnp.float32),
                   precision=jax.lax.Precision.HIGHEST)
    if logits:
        p = jax.nn.sigmoid(p)
    if elu:
        p = jnp.where(p > 0.0, p, jnp.expm1(p))
    diff = p[:, :, None, :] - p[:, None, :, :]
    return jnp.sqrt(jnp.sum(diff * diff, axis=-1))


if __name__ == "__main__":
    # config analogous to the module's kwargs `c`
    c = dict(
        layer_size=32,
        matrix_rank=16,
        log_normalize=True,
        sqrt_normalize=False,
        logits=True,
        elu=False,
    )

    B, S = 2, 8  # (num_sentences, tokens per sentence)

    key = jax.random.PRNGKey(0)
    k_w, k_x = jax.random.split(key)

    # nn.init.uniform_(weights, -1, 1) on zeros((layer_size, matrix_rank))
    weights = jax.random.uniform(
        k_w, (c["layer_size"], c["matrix_rank"]),
        minval=-1.0, maxval=1.0, dtype=jnp.float32)

    sentences = jax.random.normal(k_x, (B, S, c["layer_size"]),
                                  dtype=jnp.float32)

    flags = dict(
        log_normalize=c["log_normalize"],
        sqrt_normalize=c["sqrt_normalize"],
        logits=c["logits"],
        elu=c["elu"],
    )

    out = transform_optimizer_forward(sentences, weights, **flags)
    out = jax.block_until_ready(out)

    ref = _reference_forward(sentences, weights, **flags)
    assert out.shape == (B, S, S)
    assert jnp.allclose(out, ref, atol=1e-4, rtol=1e-4), "mismatch vs reference"

    print("KERNEL_OK")
</pallas_src>

<mosaic_0001>
module attributes {stable_mosaic.version = 11 : i64} {
  func.func @_transform_kernel(%arg0: i32, %arg1: memref<1x8x32xf32, #tpu.memory_space<vmem>>, %arg2: memref<32x16xf32, #tpu.memory_space<vmem>>, %arg3: memref<1x1x64xf32, #tpu.memory_space<vmem>>) attributes {dimension_semantics = [#tpu.dimension_semantics<parallel>], iteration_bounds = array<i64: 2>, scalar_prefetch = 0 : i64, scratch_operands = 0 : i64, tpu.core_type = #tpu.core_type<tc>, window_params = [{transform_indices = @transform_0, window_bounds = array<i64: 1, 8, 32>}, {pipeline_mode = #tpu.pipeline_mode<synchronous>, transform_indices = @transform_1, window_bounds = array<i64: 32, 16>}, {transform_indices = @transform_2, window_bounds = array<i64: 1, 1, 64>}]} {
    %c0 = arith.constant 0 : index
    %c0_0 = arith.constant 0 : index
    %c0_1 = arith.constant 0 : index
    %0 = vector.load %arg1[%c0, %c0_0, %c0_1] : memref<1x8x32xf32, #tpu.memory_space<vmem>>, vector<1x8x32xf32>
    %1 = math.absf %0 : vector<1x8x32xf32>
    %cst = arith.constant 1.000000e+00 : f32
    %2 = vector.broadcast %cst : f32 to vector<1x8x32xf32>
    %3 = arith.addf %1, %2 : vector<1x8x32xf32>
    %4 = math.log %3 : vector<1x8x32xf32>
    %c0_2 = arith.constant 0 : index
    %c0_3 = arith.constant 0 : index
    %5 = vector.load %arg2[%c0_2, %c0_3] : memref<32x16xf32, #tpu.memory_space<vmem>>, vector<32x16xf32>
    %6 = vector.shape_cast %4 : vector<1x8x32xf32> to vector<8x32xf32>
    %cst_4 = arith.constant dense<0.000000e+00> : vector<8x16xf32>
    %7 = tpu.matmul %6, %5, %cst_4 {dimension_numbers = #tpu.dot_dimension_numbers<[1], [0], [0], [1], [0, 0, 1, 1], [], []>} : vector<8x32xf32>, vector<32x16xf32>, vector<8x16xf32> -> vector<8x16xf32>
    %8 = arith.negf %7 : vector<8x16xf32>
    %9 = math.exp %8 : vector<8x16xf32>
    %cst_5 = arith.constant 1.000000e+00 : f32
    %10 = vector.broadcast %cst_5 : f32 to vector<8x16xf32>
    %11 = arith.addf %10, %9 : vector<8x16xf32>
    %12 = arith.divf %10, %11 : vector<8x16xf32>
    %13 = vector.shape_cast %12 : vector<8x16xf32> to vector<1x8x16xf32>
    %14 = vector.shape_cast %13 : vector<1x8x16xf32> to vector<1x8x1x16xf32>
    %15 = vector.shape_cast %13 : vector<1x8x16xf32> to vector<1x1x8x16xf32>
    %16 = vector.broadcast %14 : vector<1x8x1x16xf32> to vector<1x8x8x16xf32>
    %17 = vector.broadcast %15 : vector<1x1x8x16xf32> to vector<1x8x8x16xf32>
    %18 = arith.subf %16, %17 : vector<1x8x8x16xf32>
    %19 = arith.mulf %18, %18 : vector<1x8x8x16xf32>
    %cst_6 = arith.constant dense<0.000000e+00> : vector<1x8x8xf32>
    %20 = vector.multi_reduction <add>, %19, %cst_6 [3] : vector<1x8x8x16xf32> to vector<1x8x8xf32>
    %21 = math.sqrt %20 : vector<1x8x8xf32>
    %22 = vector.shape_cast %21 : vector<1x8x8xf32> to vector<1x1x64xf32>
    %c0_7 = arith.constant 0 : index
    %c0_8 = arith.constant 0 : index
    %c0_9 = arith.constant 0 : index
    %23 = vector.load %arg3[%c0_7, %c0_8, %c0_9] : memref<1x1x64xf32, #tpu.memory_space<vmem>>, vector<1x1x64xf32>
    tpu.vector_store %arg3[%c0_7, %c0_8, %c0_9], %22 {strides = array<i32>} : memref<1x1x64xf32, #tpu.memory_space<vmem>>, vector<1x1x64xf32>,
    return
  }
  func.func @transform_0(%arg0: i32) -> (i32, i32, i32) {
    %c0_i32 = arith.constant 0 : i32
    %c0_i32_0 = arith.constant 0 : i32
    %c0_i32_1 = arith.constant 0 : i32
    return %arg0, %c0_i32, %c0_i32_0 : i32, i32, i32
  }
  func.func @transform_1(%arg0: i32) -> (i32, i32) {
    %c0_i32 = arith.constant 0 : i32
    %c0_i32_0 = arith.constant 0 : i32
    %c0_i32_1 = arith.constant 0 : i32
    return %c0_i32, %c0_i32_0 : i32, i32
  }
  func.func @transform_2(%arg0: i32) -> (i32, i32, i32) {
    %c0_i32 = arith.constant 0 : i32
    %c0_i32_0 = arith.constant 0 : i32
    %c0_i32_1 = arith.constant 0 : i32
    return %arg0, %c0_i32, %c0_i32_0 : i32, i32, i32
  }
}

</mosaic_0001>

<llo_original>
// kernel: tpu_custom_call.1
$region0: #{tpu_custom_call.1}
  #allocation0 [shape = 'u32[]', space=smem, size = 0x4, offset = 0x4, fixed_abs, tag = 'smem constant byte address 0x4 - core index']
  #allocation1 [shape = 'u32[144,128]{1,0:T(1,128)}', space=vmem, size = 0x12000, scoped, tag = 'internal scratch']
  %s0 = inlined_call_operand.vmem [shape: f32[2,8,32], index: 0, kind: input, shape index: {}]
  %s1 = inlined_call_operand.vmem [shape: f32[32,16], index: 1, kind: input, shape index: {}]
  %s2 = inlined_call_operand.hbm [shape: f32[2,1,64], index: 2, kind: output, shape index: {}]
  %s3 = sld [smem:[#allocation0]]
  $region41: #{tpu_custom_call.1} parent=0
    _
  %s5 = ssub.s32 1, %s3
  %s6 = scalar_select 0, %s5, %s3
  $region1: #{tpu_custom_call.1} parent=0
    #allocation2 [shape = 'u8[1024]{0}', space=vmem, size = 0x400, scoped, tag = 'output window, operand 0']
    #allocation3 [shape = 's32[2]{0}', space=sflag, size = 0x8, scoped, tag = 'scoped memory for tpu_custom_call.1']
    %7 = vsyncpa [#allocation3], 0
    %s8 = scalar_lea.sflag [#allocation3], 1
    %9 = vsyncpa %s8, 0
    loop: start=0, step=1, limit=4
    $region2: #{tpu_custom_call.1} parent=1 // loop_pre_header
      _
    $region3: #{tpu_custom_call.1} parent=1 // loop_header
      %s11 = sphi 0, %s15
      %p12 = scmp.ge.s32.totalorder %s11, 4
      %s21 = sphi 0, %s23
      %s24 = sphi 0, %s21
      %s25 = sphi 0, %s24
      %s41 = sphi 0, %s25
      %s45 = sphi 0, %s45
      %s47 = sphi 0, %s45
      %s48 = sphi 0, %s47
      %s62 = sphi 0, %s48
      %s68 = sphi 0, %s70
      %s71 = sphi 0, %s68
      %s72 = sphi 0, %s71
      %s88 = sphi 0, %s72
    $region4: #{tpu_custom_call.1} parent=1 // loop_header_branch
      %14 = sbr.rel (%p12) target = $region8
    $region5: #{tpu_custom_call.1} parent=1 // loop_body
      %s16 = ssub.s32 %s11, 1
      %s17 = ssub.s32 %s11, 2
      %s18 = sadd.s32 %s11, 1
      %s19 = ssub.s32 %s11, %s18
      %p20 = scmp.eq.s32.totalorder %s19, 0
      %s22 = sadd.s32 %s21, 1
      %s23 = scalar_select %p20, %s21, %s22
      %p26 = pneg %p20
      %p27 = scmp.eq.s32.totalorder %s11, 1
      %p28 = por %p26, %p27
      %p29 = scmp.ne.s32.totalorder %s21, %s24
      %p30 = scmp.eq.s32.totalorder %s11, 0
      %p31 = por %p29, %p30
      %p32 = scmp.ne.s32.totalorder %s21, %s24
      %p33 = scmp.eq.s32.totalorder %s16, 1
      %p34 = por %p32, %p33
      %p35 = scmp.ne.s32.totalorder %s24, %s25
      %p36 = scmp.eq.s32.totalorder %s16, 0
      %p37 = por %p35, %p36
      %p38 = scmp.ne.s32.totalorder %s24, %s25
      %p39 = scmp.eq.s32.totalorder %s17, 1
      %p40 = por %p38, %p39
      %p42 = scmp.ne.s32.totalorder %s25, %s41
      %p43 = scmp.eq.s32.totalorder %s17, 0
      %p44 = por %p42, %p43
      %s46 = sadd.s32 %s45, 1
      %p49 = scmp.eq.s32.totalorder %s11, 1
      %p50 = scmp.ne.s32.totalorder %s45, %s47
      %p51 = scmp.eq.s32.totalorder %s11, 0
      %p52 = por %p50, %p51
      %p53 = scmp.ne.s32.totalorder %s45, %s47
      %p54 = scmp.eq.s32.totalorder %s16, 1
      %p55 = por %p53, %p54
      %p56 = scmp.ne.s32.totalorder %s47, %s48
      %p57 = scmp.eq.s32.totalorder %s16, 0
      %p58 = por %p56, %p57
      %p59 = scmp.ne.s32.totalorder %s47, %s48
      %p60 = scmp.eq.s32.totalorder %s17, 1
      %p61 = por %p59, %p60
      %p63 = scmp.ne.s32.totalorder %s48, %s62
      %p64 = scmp.eq.s32.totalorder %s17, 0
      %p65 = por %p63, %p64
      %s66 = ssub.s32 %s11, %s18
      %p67 = scmp.eq.s32.totalorder %s66, 0
      %s69 = sadd.s32 %s68, 1
      %s70 = scalar_select %p67, %s68, %s69
      %p73 = pneg %p67
      %p74 = scmp.eq.s32.totalorder %s11, 1
      %p75 = por %p73, %p74
      %p76 = scmp.ne.s32.totalorder %s68, %s71
      %p77 = scmp.eq.s32.totalorder %s11, 0
      %p78 = por %p76, %p77
      %p79 = scmp.ne.s32.totalorder %s68, %s71
      %p80 = scmp.eq.s32.totalorder %s16, 1
      %p81 = por %p79, %p80
      %p82 = scmp.ne.s32.totalorder %s71, %s72
      %p83 = scmp.eq.s32.totalorder %s16, 0
      %p84 = por %p82, %p83
      %p85 = scmp.ne.s32.totalorder %s71, %s72
      %p86 = scmp.eq.s32.totalorder %s17, 1
      %p87 = por %p85, %p86
      %p89 = scmp.ne.s32.totalorder %s72, %s88
      %p90 = scmp.eq.s32.totalorder %s17, 0
      %p91 = por %p89, %p90
      %p92 = scmp.le.s32.totalorder 1, %s11
      %p93 = scmp.lt.s32.totalorder %s11, 3
      %p94 = pnand %p92, %p93
      %p95 = pneg %p94
      // Predicated region
      $region9: #{tpu_custom_call.1} parent=5 // pred_check
        _
      $region10: #{tpu_custom_call.1} parent=5 // pred_check_branch
        %97 = sbr.rel (%p94) target = $region12
      $region11: #{tpu_custom_call.1} parent=5 // pred_region
        %s98 = ssub.s32 %s11, 1
        // Predicated region
        $region13: #{tpu_custom_call.1} parent=11 // pred_check
          %p99 = pneg %p58
        $region14: #{tpu_custom_call.1} parent=11 // pred_check_branch
          %101 = sbr.rel (%p99) target = $region16
        $region15: #{tpu_custom_call.1} parent=11 // pred_region
          _
        $region16: #{tpu_custom_call.1} parent=11 // pred_fallthru
          _
      $region12: #{tpu_custom_call.1} parent=5 // pred_fallthru
        _
      %p102 = scmp.lt.s32.totalorder %s11, 2
      // Predicated region
      $region17: #{tpu_custom_call.1} parent=5 // pred_check
        %p103 = pneg %p102
      $region18: #{tpu_custom_call.1} parent=5 // pred_check_branch
        %105 = sbr.rel (%p103) target = $region20
      $region19: #{tpu_custom_call.1} parent=5 // pred_region
        // Predicated region
        $region21: #{tpu_custom_call.1} parent=19 // pred_check
          %p106 = pneg %p31
        $region22: #{tpu_custom_call.1} parent=19 // pred_check_branch
          %108 = sbr.rel (%p106) target = $region24
        $region23: #{tpu_custom_call.1} parent=19 // pred_region
          %p109 = scmp.lt.s32.totalorder %s11, 1
          %s110 = scalar_select %p109, %s11, 1
          %s111 = smul.addr %s110, 8
          %s112 = scalar_lea.vmem %s0, %s111
        $region24: #{tpu_custom_call.1} parent=19 // pred_fallthru
          _
      $region20: #{tpu_custom_call.1} parent=5 // pred_fallthru
        _
      %p113 = scmp.le.s32.totalorder 1, %s11
      %p114 = scmp.lt.s32.totalorder %s11, 3
      %p115 = pnand %p113, %p114
      %p116 = pneg %p115
      // Predicated region
      $region25: #{tpu_custom_call.1} parent=5 // pred_check
        _
      $region26: #{tpu_custom_call.1} parent=5 // pred_check_branch
        %118 = sbr.rel (%p115) target = $region28
      $region27: #{tpu_custom_call.1} parent=5 // pred_region
        %s119 = ssub.s32 %s11, 1
        %p120 = scmp.lt.s32.totalorder %s16, 1
        %s121 = scalar_select %p120, %s16, 1
        %s122 = smul.addr %s121, 8
        %s123 = scalar_lea.vmem %s0, %s122
        %p124 = pneg %p37
        %p125 = pneg %p34
        %p126 = pneg %p58
        %p127 = pneg %p55
        %p128 = pneg %p84
        %p129 = pneg %p81
        %s130 = sand.u32 %s71, 1
        %s131 = scalar_lea.sflag [#allocation3], %s130
        %s132 = sand.u32 %s71, 1
        %s133 = scalar_lea.vmem [#allocation2], %s132
        %p134 = scmp.lt.s32.totalorder %s16, 1
        %s135 = scalar_select %p134, %s16, 1
        %s136 = smul.addr %s135, 8
        %s137 = scalar_lea.vmem %s0, %s136
        %v138 = vld [vmem:[%s137] sm:$0xff]
        %v139 = vand.u32 2147483647, %v138
        %v140 = vadd.f32 %v139, 1.0
        %v141 = vlog2.pop %v140
        %v142 = vmul.f32 %v141, 0.6931472
        %v143 = vld [vmem:[%s1] sm:$0xff]
        %v144 = vld [vmem:[%s1 + $0x8] sm:$0xff]
        %v145 = vld [vmem:[%s1 + $0x10] sm:$0xff]
        %v146 = vld [vmem:[%s1 + $0x18] sm:$0xff]
        %vm147 = vcmask 261120
        %v149 = vsel %vm147, %v142, 0
        %151 = vmatprep.subr.mxu0 0.0
        %152 = vmatpush1.msra.mxu0 %v143
        %153 = vmatprep.subr.mxu0 0.0
        %154 = vmatpush1.msra.mxu0 %v144
        %155 = vmatprep.subr.mxu0 0.0
        %156 = vmatpush1.msra.mxu0 %v145
        %157 = vmatprep.subr.mxu0 0.0
        %158 = vmatpush1.msra.mxu0 %v146
        %159 = vmatprep.subr.mxu0 0.0
        %160 = vmatpush1.msra.mxu0 0.0
        %161 = vmatprep.subr.mxu0 0.0
        %162 = vmatpush1.msra.mxu0 0.0
        %163 = vmatprep.subr.mxu0 0.0
        %164 = vmatpush1.msra.mxu0 0.0
        %165 = vmatprep.subr.mxu0 0.0
        %166 = vmatpush1.msra.mxu0 0.0
        %167 = vmatprep.subr.mxu0 0.0
        %168 = vmatpush1.msra.mxu0 0.0
        %169 = vmatprep.subr.mxu0 0.0
        %170 = vmatpush1.msra.mxu0 0.0
        %171 = vmatprep.subr.mxu0 0.0
        %172 = vmatpush1.msra.mxu0 0.0
        %173 = vmatprep.subr.mxu0 0.0
        %174 = vmatpush1.msra.mxu0 0.0
        %175 = vmatprep.subr.mxu0 0.0
        %176 = vmatpush1.msra.mxu0 0.0
        %177 = vmatprep.subr.mxu0 0.0
        %178 = vmatpush1.msra.mxu0 0.0
        %179 = vmatprep.subr.mxu0 0.0
        %180 = vmatpush1.msra.mxu0 0.0
        %181 = vmatprep.subr.mxu0 0.0
        %182 = vmatpush1.msra.mxu0 0.0
        %183 = vmatprep.subr.mxu0 0.0
        %184 = vmatpush1.msra.mxu0 0.0
        %185 = vmatprep.subr.mxu0 0.0
        %186 = vmatpush1.msra.mxu0 0.0
        %187 = vmatprep.subr.mxu0 0.0
        %188 = vmatpush1.msra.mxu0 0.0
        %189 = vmatprep.subr.mxu0 0.0
        %190 = vmatpush1.msra.mxu0 0.0
        %191 = vmatprep.subr.mxu0 0.0
        %192 = vmatpush1.msra.mxu0 0.0
        %193 = vmatprep.subr.mxu0 0.0
        %194 = vmatpush1.msra.mxu0 0.0
        %195 = vmatprep.subr.mxu0 0.0
        %196 = vmatpush1.msra.mxu0 0.0
        %197 = vmatprep.subr.mxu0 0.0
        %198 = vmatpush1.msra.mxu0 0.0
        %199 = vmatprep.subr.mxu0 0.0
        %200 = vmatpush1.msra.mxu0 0.0
        %201 = vmatprep.subr.mxu0 0.0
        %202 = vmatpush1.msra.mxu0 0.0
        %203 = vmatprep.subr.mxu0 0.0
        %204 = vmatpush1.msra.mxu0 0.0
        %205 = vmatprep.subr.mxu0 0.0
        %206 = vmatpush1.msra.mxu0 0.0
        %207 = vmatprep.subr.mxu0 0.0
        %208 = vmatpush1.msra.mxu0 0.0
        %209 = vmatprep.subr.mxu0 0.0
        %210 = vmatpush1.msra.mxu0 0.0
        %211 = vmatprep.subr.mxu0 0.0
        %212 = vmatpush1.msra.mxu0 0.0
        %213 = vmatprep.subr.mxu0 0.0
        %214 = vmatpush1.msra.mxu0 0.0
        %215 = vmatprep.mubr.f32.mxu0 0.0
        %216 = vmatmul.mubr.f32.gmra.mrb[0].mxu0 %v149
        %v217 = vpop.f32.mrb[0].mxu0
        %v218 = vadd.f32 0.0, %v217
        %v219 = vpop.f32.mrb[0].mxu0
        %220 = vdwg.mxu0
        %v221 = vxor.u32 %v218, 2147483648
        %v222 = vmul.f32 %v221, 1.442695
        %v223 = vpow.pop %v222
        %v224 = vadd.f32 %v223, 1.0
        %v225 = vrcp.pop %v224
        %v226 = vmul.f32 1.0, %v225
        %v228 = vcombine.high %v226, %v226
        %v230 = vunpack.c.l.s4 1966171168
        %v231 = vunpack.c.0.s8 %v230
        %v232 = vlaneseq
        %v233 = vshrl.u32 %v232, 7
        %v234 = vsub.s32 %v231, %v233
        %v235 = vrot.slane %v226, %v234
        %v237 = vunpack.c.l.s4 1966171168
        %v238 = vunpack.c.0.s8 %v237
        %v239 = vlaneseq
        %v240 = vshrl.u32 %v239, 7
        %v241 = vsub.s32 %v238, %v240
        %v242 = vrot.slane %v228, %v241
        %v243 = vcombine.high %v235, %v235
        %v244 = vcombine.high %v242, %v242
        %v246 = vunpack.c.l.s4 1966171168
        %v247 = vunpack.c.0.s8 %v246
        %v248 = vlaneseq
        %v249 = vshrl.u32 %v248, 7
        %v250 = vsub.s32 %v247, %v249
        %v251 = vrot.slane %v235, %v250
        %v253 = vunpack.c.l.s4 1966171168
        %v254 = vunpack.c.0.s8 %v253
        %v255 = vlaneseq
        %v256 = vshrl.u32 %v255, 7
        %v257 = vsub.s32 %v254, %v256
        %v258 = vrot.slane %v242, %v257
        %v260 = vunpack.c.l.s4 1966171168
        %v261 = vunpack.c.0.s8 %v260
        %v262 = vlaneseq
        %v263 = vshrl.u32 %v262, 7
        %v264 = vsub.s32 %v261, %v263
        %v265 = vrot.slane %v243, %v264
        %v267 = vunpack.c.l.s4 1966171168
        %v268 = vunpack.c.0.s8 %v267
        %v269 = vlaneseq
        %v270 = vshrl.u32 %v269, 7
        %v271 = vsub.s32 %v268, %v270
        %v272 = vrot.slane %v244, %v271
        %v273 = vcombine.high %v251, %v251
        %v274 = vcombine.high %v258, %v258
        %v275 = vcombine.high %v265, %v265
        %v276 = vcombine.high %v272, %v272
        %v277 = vlaneseq
        %v278 = vshrl.u32 %v277, 7
        %v279 = vsub.s32 0, %v278
        %v280 = vrot.slane %v251, %v279
        %v281 = vlaneseq
        %v282 = vshrl.u32 %v281, 7
        %v283 = vsub.s32 0, %v282
        %v284 = vrot.slane %v265, %v283
        %v285 = vlaneseq
        %v286 = vshrl.u32 %v285, 7
        %v287 = vsub.s32 0, %v286
        %v288 = vrot.slane %v273, %v287
        %v289 = vlaneseq
        %v290 = vshrl.u32 %v289, 7
        %v291 = vsub.s32 0, %v290
        %v292 = vrot.slane %v275, %v291
        %v293 = vlaneseq
        %v294 = vshrl.u32 %v293, 7
        %v295 = vsub.s32 0, %v294
        %v296 = vrot.slane %v258, %v295
        %v297 = vlaneseq
        %v298 = vshrl.u32 %v297, 7
        %v299 = vsub.s32 0, %v298
        %v300 = vrot.slane %v272, %v299
        %v301 = vlaneseq
        %v302 = vshrl.u32 %v301, 7
        %v303 = vsub.s32 0, %v302
        %v304 = vrot.slane %v274, %v303
        %v305 = vlaneseq
        %v306 = vshrl.u32 %v305, 7
        %v307 = vsub.s32 0, %v306
        %v308 = vrot.slane %v276, %v307
        %v317 = vsub.f32 %v280, %v226
        %v318 = vsub.f32 %v284, %v226
        %v319 = vsub.f32 %v288, %v226
        %v320 = vsub.f32 %v292, %v226
        %v321 = vsub.f32 %v296, %v226
        %v322 = vsub.f32 %v300, %v226
        %v323 = vsub.f32 %v304, %v226
        %v324 = vsub.f32 %v308, %v226
        %v325 = vmul.f32 %v317, %v317
        %v326 = vmul.f32 %v318, %v318
        %v327 = vmul.f32 %v319, %v319
        %v328 = vmul.f32 %v320, %v320
        %v329 = vmul.f32 %v321, %v321
        %v330 = vmul.f32 %v322, %v322
        %v331 = vmul.f32 %v323, %v323
        %v332 = vmul.f32 %v324, %v324
        %vm333 = vcmask 130048
        %v334 = vsel %vm333, %v325, 0.0
        %335 = vadd.xlane.f32.xlu0 %v334
        %v336 = vpop.xlane.xlu0 %335
        %v337 = vsel %vm333, %v326, 0.0
        %338 = vadd.xlane.f32.xlu0 %v337
        %v339 = vpop.xlane.xlu0 %338
        %v340 = vsel %vm333, %v327, 0.0
        %341 = vadd.xlane.f32.xlu0 %v340
        %v342 = vpop.xlane.xlu0 %341
        %v343 = vsel %vm333, %v328, 0.0
        %344 = vadd.xlane.f32.xlu0 %v343
        %v345 = vpop.xlane.xlu0 %344
        %v346 = vsel %vm333, %v329, 0.0
        %347 = vadd.xlane.f32.xlu0 %v346
        %v348 = vpop.xlane.xlu0 %347
        %v349 = vsel %vm333, %v330, 0.0
        %350 = vadd.xlane.f32.xlu0 %v349
        %v351 = vpop.xlane.xlu0 %350
        %v352 = vsel %vm333, %v331, 0.0
        %353 = vadd.xlane.f32.xlu0 %v352
        %v354 = vpop.xlane.xlu0 %353
        %v355 = vsel %vm333, %v332, 0.0
        %356 = vadd.xlane.f32.xlu0 %v355
        %v357 = vpop.xlane.xlu0 %356
        %v358 = vrsqrt.pop %v336
        %v359 = vmul.f32 %v336, %v358
        %vm360 = vcmp.eq.f32.partialorder %v336, inf
        %v361 = vsel %vm360, %v336, %v359
        %vm362 = vcmp.eq.f32.partialorder %v336, 0.0
        %v363 = vand.u32 %v336, 2147483648
        %v364 = vsel %vm362, %v363, %v361
        %v365 = vrsqrt.pop %v339
        %v366 = vmul.f32 %v339, %v365
        %vm367 = vcmp.eq.f32.partialorder %v339, inf
        %v368 = vsel %vm367, %v339, %v366
        %vm369 = vcmp.eq.f32.partialorder %v339, 0.0
        %v370 = vand.u32 %v339, 2147483648
        %v371 = vsel %vm369, %v370, %v368
        %v372 = vrsqrt.pop %v342
        %v373 = vmul.f32 %v342, %v372
        %vm374 = vcmp.eq.f32.partialorder %v342, inf
        %v375 = vsel %vm374, %v342, %v373
        %vm376 = vcmp.eq.f32.partialorder %v342, 0.0
        %v377 = vand.u32 %v342, 2147483648
        %v378 = vsel %vm376, %v377, %v375
        %v379 = vrsqrt.pop %v345
        %v380 = vmul.f32 %v345, %v379
        %vm381 = vcmp.eq.f32.partialorder %v345, inf
        %v382 = vsel %vm381, %v345, %v380
        %vm383 = vcmp.eq.f32.partialorder %v345, 0.0
        %v384 = vand.u32 %v345, 2147483648
        %v385 = vsel %vm383, %v384, %v382
        %v386 = vrsqrt.pop %v348
        %v387 = vmul.f32 %v348, %v386
        %vm388 = vcmp.eq.f32.partialorder %v348, inf
        %v389 = vsel %vm388, %v348, %v387
        %vm390 = vcmp.eq.f32.partialorder %v348, 0.0
        %v391 = vand.u32 %v348, 2147483648
        %v392 = vsel %vm390, %v391, %v389
        %v393 = vrsqrt.pop %v351
        %v394 = vmul.f32 %v351, %v393
        %vm395 = vcmp.eq.f32.partialorder %v351, inf
        %v396 = vsel %vm395, %v351, %v394
        %vm397 = vcmp.eq.f32.partialorder %v351, 0.0
        %v398 = vand.u32 %v351, 2147483648
        %v399 = vsel %vm397, %v398, %v396
        %v400 = vrsqrt.pop %v354
        %v401 = vmul.f32 %v354, %v400
        %vm402 = vcmp.eq.f32.partialorder %v354, inf
        %v403 = vsel %vm402, %v354, %v401
        %vm404 = vcmp.eq.f32.partialorder %v354, 0.0
        %v405 = vand.u32 %v354, 2147483648
        %v406 = vsel %vm404, %v405, %v403
        %v407 = vrsqrt.pop %v357
        %v408 = vmul.f32 %v357, %v407
        %vm409 = vcmp.eq.f32.partialorder %v357, inf
        %v410 = vsel %vm409, %v357, %v408
        %vm411 = vcmp.eq.f32.partialorder %v357, 0.0
        %v412 = vand.u32 %v357, 2147483648
        %v413 = vsel %vm411, %v412, %v410
        %v422 = vlaneseq
        %v423 = vand.u32 %v422, 127
        %v424 = vlaneseq
        %v425 = vshrl.u32 %v424, 7
        %v426 = vsub.s32 %v423, %v425
        %v427 = vrot.slane %v364, %v426
        %v428 = vlaneseq
        %v429 = vshrl.u32 %v428, 7
        %v430 = vsub.s32 %v423, %v429
        %v431 = vrot.slane %v371, %v430
        %v432 = vlaneseq
        %v433 = vshrl.u32 %v432, 7
        %v434 = vsub.s32 %v423, %v433
        %v435 = vrot.slane %v378, %v434
        %v436 = vlaneseq
        %v437 = vshrl.u32 %v436, 7
        %v438 = vsub.s32 %v423, %v437
        %v439 = vrot.slane %v385, %v438
        %v440 = vlaneseq
        %v441 = vshrl.u32 %v440, 7
        %v442 = vsub.s32 %v423, %v441
        %v443 = vrot.slane %v392, %v442
        %v444 = vlaneseq
        %v445 = vshrl.u32 %v444, 7
        %v446 = vsub.s32 %v423, %v445
        %v447 = vrot.slane %v399, %v446
        %v448 = vlaneseq
        %v449 = vshrl.u32 %v448, 7
        %v450 = vsub.s32 %v423, %v449
        %v451 = vrot.slane %v406, %v450
        %v452 = vlaneseq
        %v453 = vshrl.u32 %v452, 7
        %v454 = vsub.s32 %v423, %v453
        %v455 = vrot.slane %v413, %v454
        %vm456 = vcmask 1041409
        %v457 = vsel %vm456, %v431, %v427
        %vm458 = vcmask 1042434
        %v459 = vsel %vm458, %v435, %v457
        %vm460 = vcmask 1043459
        %v461 = vsel %vm460, %v439, %v459
        %vm462 = vcmask 1044484
        %v463 = vsel %vm462, %v443, %v461
        %vm464 = vcmask 1045509
        %v465 = vsel %vm464, %v447, %v463
        %vm466 = vcmask 1046534
        %v467 = vsel %vm466, %v451, %v465
        %vm468 = vcmask 1047559
        %v469 = vsel %vm468, %v455, %v467
        %v471 = vcombine.high %v469, 0.0
        %v473 = vunpack.c.l.s4 1983009808
        %v474 = vunpack.c.0.s8 %v473
        %v475 = vlaneseq
        %v476 = vshrl.u32 %v475, 7
        %v477 = vsub.s32 %v474, %v476
        %v478 = vrot.slane %v469, %v477
        %v480 = vunpack.c.l.s4 1983009808
        %v481 = vunpack.c.0.s8 %v480
        %v482 = vlaneseq
        %v483 = vshrl.u32 %v482, 7
        %v484 = vsub.s32 %v481, %v483
        %v485 = vrot.slane %v471, %v484
        %v486 = vcombine.high %v478, 0.0
        %v488 = vunpack.c.l.s4 1934713408
        %v489 = vunpack.c.0.s8 %v488
        %v490 = vlaneseq
        %v491 = vshrl.u32 %v490, 7
        %v492 = vsub.s32 %v489, %v491
        %v493 = vrot.slane %v478, %v492
        %v495 = vunpack.c.l.s4 1934713408
        %v496 = vunpack.c.0.s8 %v495
        %v497 = vlaneseq
        %v498 = vshrl.u32 %v497, 7
        %v499 = vsub.s32 %v496, %v498
        %v500 = vrot.slane %v486, %v499
        %v501 = vcombine.high %v485, 0.0
        %v503 = vunpack.c.l.s4 1934713408
        %v504 = vunpack.c.0.s8 %v503
        %v505 = vlaneseq
        %v506 = vshrl.u32 %v505, 7
        %v507 = vsub.s32 %v504, %v506
        %v508 = vrot.slane %v485, %v507
        %v510 = vunpack.c.l.s4 1934713408
        %v511 = vunpack.c.0.s8 %v510
        %v512 = vlaneseq
        %v513 = vshrl.u32 %v512, 7
        %v514 = vsub.s32 %v511, %v513
        %v515 = vrot.slane %v501, %v514
        %v516 = vcombine.high %v493, 0.0
        %v517 = vcombine.high %v500, 0.0
        %v518 = vcombine.high %v508, 0.0
        %v519 = vcombine.high %v515, 0.0
        %521 = vrot.lane.b32.xlu0 %v516, 8
        %v522 = vpop.permute.xlu0 %521
        %525 = vrot.lane.b32.xlu0 %v500, 16
        %v526 = vpop.permute.xlu0 %525
        %529 = vrot.lane.b32.xlu0 %v517, 24
        %v530 = vpop.permute.xlu0 %529
        %533 = vrot.lane.b32.xlu0 %v508, 32
        %v534 = vpop.permute.xlu0 %533
        %537 = vrot.lane.b32.xlu0 %v518, 40
        %v538 = vpop.permute.xlu0 %537
        %541 = vrot.lane.b32.xlu0 %v515, 48
        %v542 = vpop.permute.xlu0 %541
        %545 = vrot.lane.b32.xlu0 %v519, 56
        %v546 = vpop.permute.xlu0 %545
        %vm548 = vcmask 64512
        %v549 = vsel %vm548, %v493, %v522
        %v550 = vsel %vm333, %v549, %v526
        %vm551 = vcmask 195584
        %v552 = vsel %vm551, %v550, %v530
        %v553 = vsel %vm147, %v552, %v534
        %vm554 = vcmask 326656
        %v555 = vsel %vm554, %v553, %v538
        %vm556 = vcmask 392192
        %v557 = vsel %vm556, %v555, %v542
        %vm558 = vcmask 457728
        %v559 = vsel %vm558, %v557, %v546
        %vm560 = vcmask 516096
        %561 = vst.msk [vmem:[%s133] sm:$0x1] %vm560, %v559
        %s562 = sand.u32 %s71, 1
        %s563 = scalar_lea.sflag [#allocation3], %s562
        %s564 = sand.u32 %s71, 1
        %s565 = scalar_lea.vmem [#allocation2], %s564
        // Predicated region
        $region29: #{tpu_custom_call.1} parent=27 // pred_check
          %p566 = pneg %p81
        $region30: #{tpu_custom_call.1} parent=27 // pred_check_branch
          %568 = sbr.rel (%p566) target = $region32
        $region31: #{tpu_custom_call.1} parent=27 // pred_region
          %s570 = ssub.s32 16, 16
          %571 = vsyncadd %s563, %s570
          %s572 = smul.addr %s16, 16
          %s573 = scalar_lea.hbm %s2, %s572
          %s575 = sshll.u32 %s565, 4
          %s576 = int_to_ptr.vmem [resolvable:$true] %s575
          %578 = dma.vmem_to_hbm [thread:$0]  %s576, 16, %s573, %s563
        $region32: #{tpu_custom_call.1} parent=27 // pred_fallthru
          _
      $region28: #{tpu_custom_call.1} parent=5 // pred_fallthru
        _
      %p579 = scmp.le.s32.totalorder 2, %s11
      // Predicated region
      $region33: #{tpu_custom_call.1} parent=5 // pred_check
        %p580 = pneg %p579
      $region34: #{tpu_custom_call.1} parent=5 // pred_check_branch
        %582 = sbr.rel (%p580) target = $region36
      $region35: #{tpu_custom_call.1} parent=5 // pred_region
        %s583 = ssub.s32 %s11, 2
        // Predicated region
        $region37: #{tpu_custom_call.1} parent=35 // pred_check
          %p584 = pneg %p87
        $region38: #{tpu_custom_call.1} parent=35 // pred_check_branch
          %586 = sbr.rel (%p584) target = $region40
        $region39: #{tpu_custom_call.1} parent=35 // pred_region
          %s587 = sand.u32 %s72, 1
          %s588 = scalar_lea.sflag [#allocation3], %s587
          %s589 = sand.u32 %s72, 1
          %s590 = scalar_lea.vmem [#allocation2], %s589
          %591 = dma.done %s588, 16
        $region40: #{tpu_custom_call.1} parent=35 // pred_fallthru
          _
      $region36: #{tpu_custom_call.1} parent=5 // pred_fallthru
        _
    $region6: #{tpu_custom_call.1} parent=1 // loop_footer
      %s15 = sadd.s32 1, %s11
    $region7: #{tpu_custom_call.1} parent=1 // loop_footer_branch
      %10 = sbr.rel target = $region3
    $region8: #{tpu_custom_call.1} parent=1 // loop_exit
      _
    %592 = vsyncpa [#allocation3], 1
    %s593 = scalar_lea.sflag [#allocation3], 1
    %594 = vsyncpa %s593, 1

</llo_original>
